<compile_context>
chip_gen: v6e
topology: v6e:2x2x1
jax: 0.10.0
libtpu: 0.0.40
codegen_flags: <defaults>
</compile_context>

<pallas_src>
import jax
import jax.numpy as jnp
from jax.experimental import pallas as pl
from jax.experimental.pallas import tpu as pltpu


def _round_up(x, m):
    return ((x + m - 1) // m) * m


def _make_lr2_kernel(tv):
    n_chunks = tv // 128

    def kernel(bias_ref, tok_ref, w_ref, out_ref, acc_ref):
        # bias_ref: SMEM (1,) f32            fused lut_bias + model_bias
        # tok_ref:  VMEM (tb, L) int32       token ids for this batch tile
        # w_ref:    VMEM (V_pad//128, 128)   full weight, lane-dense, resident
        # out_ref:  VMEM (tb, 1) f32
        # acc_ref:  VMEM (tb, 128) f32       lane-wide partial-sum accumulator
        k = pl.program_id(1)

        @pl.when(k == 0)
        def _():
            acc_ref[...] = jnp.zeros_like(acc_ref)

        _, length = tok_ref.shape
        toks = tok_ref[...]                                        # (tb, L) int32
        lane = jax.lax.broadcasted_iota(jnp.int32, (1, 128), 1)    # hoisted iota
        base = k * tv                                              # vocab-id base of tile k

        acc = acc_ref[...]
        # Static unroll over 128-lane vocab chunks; all work here is elementwise
        # VPU (compares / ORs / selects / adds) -- no per-step cross-lane reduce.
        for j in range(n_chunks):
            vid = lane + (base + j * 128)                          # (1, 128) vocab ids
            bow = toks[:, 0:1] == vid                              # (tb, 128) bool
            for t in range(1, length):                             # length is small
                bow = jnp.logical_or(bow, toks[:, t:t + 1] == vid)
            w_j = w_ref[pl.ds(k * n_chunks + j, 1), :]             # (1, 128) f32
            acc = acc + jnp.where(bow, w_j, 0.0)                   # binarize+mul fused
        acc_ref[...] = acc

        @pl.when(k == pl.num_programs(1) - 1)
        def _():
            # Single cross-lane (XLU) reduce per batch tile + bias add.
            r = jnp.sum(acc_ref[...], axis=-1, keepdims=True)      # (tb, 1)
            out_ref[...] = (r + bias_ref[0]).astype(out_ref.dtype)
            # NOTE: a lane-dense (1, tb) output would make this store unmasked,
            # but it is issued once per batch tile so the (tb, 1) store is
            # negligible at any realistic size.

    return kernel


def lr2_forward(tokens, weight, lut_bias, model_bias, vsize, *, tv=2048, tb=None):
    """tokens: (length, batch) int. weight: (1, vsize) f32. Returns (batch,) f32."""
    length, batch = tokens.shape

    if tb is None:
        tb = min(_round_up(batch, 8), 64)
    tb = _round_up(tb, 8)
    b_pad = _round_up(batch, tb)

    v128 = _round_up(vsize, 128)
    tv = _round_up(min(tv, v128), 128)
    v_pad = _round_up(vsize, tv)

    # Tiny host-side prep only: transpose tokens to (batch, length), zero-pad the
    # batch rows, and zero-pad + lane-pack the weight.  Padded vocab ids never
    # match a real token and their weights are zero, so they contribute nothing.
    toks = jnp.transpose(tokens).astype(jnp.int32)                 # (batch, L)
    if b_pad != batch:
        toks = jnp.pad(toks, ((0, b_pad - batch), (0, 0)))
    w = weight.reshape(1, vsize).astype(jnp.float32)
    if v_pad != vsize:
        w = jnp.pad(w, ((0, 0), (0, v_pad - vsize)))
    w = w.reshape(v_pad // 128, 128)                               # lane-dense weight

    fused_bias = (lut_bias + model_bias).reshape((1,)).astype(jnp.float32)
    # TODO(synk): nn.Dropout not implemented (dropout=0 path); would need
    # pltpu.prng_seed / prng_random_bits applied to the bag-of-words tile.

    grid = (b_pad // tb, v_pad // tv)

    out = pl.pallas_call(
        _make_lr2_kernel(tv),
        out_shape=jax.ShapeDtypeStruct((b_pad, 1), jnp.float32),
        grid_spec=pltpu.PrefetchScalarGridSpec(
            num_scalar_prefetch=0,
            grid=grid,
            in_specs=[
                pl.BlockSpec(memory_space=pltpu.SMEM),                  # fused bias (1,)
                pl.BlockSpec((tb, length), lambda b, k: (b, 0)),        # token tile
                pl.BlockSpec((v_pad // 128, 128), lambda b, k: (0, 0)), # full weight, DMA'd once
            ],
            out_specs=pl.BlockSpec((tb, 1), lambda b, k: (b, 0)),       # per-batch-tile result
            scratch_shapes=[pltpu.VMEM((tb, 128), jnp.float32)],        # lane-wide accumulator
        ),
        compiler_params=pltpu.CompilerParams(
            dimension_semantics=("parallel", "arbitrary"),   # batch || (v7x 2-TC), vocab = reduction
            vmem_limit_bytes=32 * 1024 * 1024,               # safe on v5e/v6e/v7x
        ),
    )(fused_bias, toks, w)

    return out.reshape((b_pad,))[:batch]


if __name__ == "__main__":
    key = jax.random.PRNGKey(0)
    k_tok, k_w, k_b = jax.random.split(key, 3)

    vsize = 1000      # not a multiple of 128 -> exercises vocab padding
    length = 12       # sequence length
    batch = 10        # not a multiple of 8  -> exercises batch padding

    # deterministic synthetic parameters (nn.Linear(vsize, 1) + zero bias Parameter)
    bound = 1.0 / (vsize ** 0.5)
    weight = jax.random.uniform(k_w, (1, vsize), jnp.float32, -bound, bound)
    lut_bias = jax.random.uniform(k_b, (1,), jnp.float32, -bound, bound)
    model_bias = jnp.zeros((1,), jnp.float32)

    tokens = jax.random.randint(k_tok, (length, batch), 0, vsize, dtype=jnp.int32)

    # Small tiles here so the test covers multiple vocab steps and batch tiles.
    out = lr2_forward(tokens, weight, lut_bias, model_bias, vsize, tv=256, tb=8)
    out = jax.block_until_ready(out)

    # reference check in plain JAX (one_hot is fine at this toy size)
    counts = jnp.sum(jax.nn.one_hot(tokens, vsize, dtype=jnp.float32), axis=0)  # (B, V)
    xb = (counts > 0).astype(jnp.float32)
    ref = xb @ weight[0] + lut_bias[0] + model_bias[0]
    assert out.shape == (batch,)
    assert jnp.allclose(out, ref, atol=1e-5, rtol=1e-5)

    print("KERNEL_OK")
</pallas_src>

<mosaic_0001>
module attributes {stable_mosaic.version = 11 : i64} {
  func.func @kernel(%arg0: i32, %arg1: i32, %arg2: memref<1xf32, #tpu.memory_space<smem>>, %arg3: memref<8x12xi32, #tpu.memory_space<vmem>>, %arg4: memref<8x128xf32, #tpu.memory_space<vmem>>, %arg5: memref<8x1xf32, #tpu.memory_space<vmem>>, %arg6: memref<8x128xf32, #tpu.memory_space<vmem>>) attributes {dimension_semantics = [#tpu.dimension_semantics<parallel>, #tpu.dimension_semantics<arbitrary>], iteration_bounds = array<i64: 2, 4>, scalar_prefetch = 0 : i64, scratch_operands = 1 : i64, tpu.core_type = #tpu.core_type<tc>, window_params = [{transform_indices = @transform_0, window_bounds = array<i64: 1>}, {transform_indices = @transform_1, window_bounds = array<i64: 8, 12>}, {pipeline_mode = #tpu.pipeline_mode<synchronous>, transform_indices = @transform_2, window_bounds = array<i64: 8, 128>}, {transform_indices = @transform_3, window_bounds = array<i64: 8, 1>}]} {
    %c0_i32 = arith.constant 0 : i32
    %0 = arith.cmpi eq, %arg1, %c0_i32 : i32
    %1 = arith.extui %0 : i1 to i32
    %c0_i32_0 = arith.constant 0 : i32
    %2 = arith.cmpi ne, %1, %c0_i32_0 : i32
    scf.if %2 {
      %cst_13 = arith.constant 0.000000e+00 : f32
      %153 = vector.broadcast %cst_13 : f32 to vector<8x128xf32>
      %c0_14 = arith.constant 0 : index
      %c0_15 = arith.constant 0 : index
      %154 = vector.load %arg6[%c0_14, %c0_15] : memref<8x128xf32, #tpu.memory_space<vmem>>, vector<8x128xf32>
      tpu.vector_store %arg6[%c0_14, %c0_15], %153 {strides = array<i32>} : memref<8x128xf32, #tpu.memory_space<vmem>>, vector<8x128xf32>,
    } else {
    }
    %c0 = arith.constant 0 : index
    %c0_1 = arith.constant 0 : index
    %3 = vector.load %arg3[%c0, %c0_1] : memref<8x12xi32, #tpu.memory_space<vmem>>, vector<8x12xi32>
    %4 = tpu.iota {dimensions = array<i32: 1>} : vector<1x128xi32>
    %c256_i32 = arith.constant 256 : i32
    %5 = arith.muli %arg1, %c256_i32 : i32
    %c0_2 = arith.constant 0 : index
    %c0_3 = arith.constant 0 : index
    %6 = vector.load %arg6[%c0_2, %c0_3] : memref<8x128xf32, #tpu.memory_space<vmem>>, vector<8x128xf32>
    %c0_i32_4 = arith.constant 0 : i32
    %7 = arith.addi %5, %c0_i32_4 : i32
    %8 = vector.broadcast %7 : i32 to vector<1x128xi32>
    %9 = arith.addi %4, %8 : vector<1x128xi32>
    %10 = vector.extract_strided_slice %3 {offsets = [0, 0], sizes = [8, 1], strides = [1, 1]} : vector<8x12xi32> to vector<8x1xi32>
    %11 = vector.broadcast %10 : vector<8x1xi32> to vector<8x128xi32>
    %12 = vector.broadcast %9 : vector<1x128xi32> to vector<8x128xi32>
    %13 = arith.cmpi eq, %11, %12 : vector<8x128xi32>
    %14 = vector.extract_strided_slice %3 {offsets = [0, 1], sizes = [8, 1], strides = [1, 1]} : vector<8x12xi32> to vector<8x1xi32>
    %15 = vector.broadcast %14 : vector<8x1xi32> to vector<8x128xi32>
    %16 = vector.broadcast %9 : vector<1x128xi32> to vector<8x128xi32>
    %17 = arith.cmpi eq, %15, %16 : vector<8x128xi32>
    %18 = arith.ori %13, %17 : vector<8x128xi1>
    %19 = vector.extract_strided_slice %3 {offsets = [0, 2], sizes = [8, 1], strides = [1, 1]} : vector<8x12xi32> to vector<8x1xi32>
    %20 = vector.broadcast %19 : vector<8x1xi32> to vector<8x128xi32>
    %21 = vector.broadcast %9 : vector<1x128xi32> to vector<8x128xi32>
    %22 = arith.cmpi eq, %20, %21 : vector<8x128xi32>
    %23 = arith.ori %18, %22 : vector<8x128xi1>
    %24 = vector.extract_strided_slice %3 {offsets = [0, 3], sizes = [8, 1], strides = [1, 1]} : vector<8x12xi32> to vector<8x1xi32>
    %25 = vector.broadcast %24 : vector<8x1xi32> to vector<8x128xi32>
    %26 = vector.broadcast %9 : vector<1x128xi32> to vector<8x128xi32>
    %27 = arith.cmpi eq, %25, %26 : vector<8x128xi32>
    %28 = arith.ori %23, %27 : vector<8x128xi1>
    %29 = vector.extract_strided_slice %3 {offsets = [0, 4], sizes = [8, 1], strides = [1, 1]} : vector<8x12xi32> to vector<8x1xi32>
    %30 = vector.broadcast %29 : vector<8x1xi32> to vector<8x128xi32>
    %31 = vector.broadcast %9 : vector<1x128xi32> to vector<8x128xi32>
    %32 = arith.cmpi eq, %30, %31 : vector<8x128xi32>
    %33 = arith.ori %28, %32 : vector<8x128xi1>
    %34 = vector.extract_strided_slice %3 {offsets = [0, 5], sizes = [8, 1], strides = [1, 1]} : vector<8x12xi32> to vector<8x1xi32>
    %35 = vector.broadcast %34 : vector<8x1xi32> to vector<8x128xi32>
    %36 = vector.broadcast %9 : vector<1x128xi32> to vector<8x128xi32>
    %37 = arith.cmpi eq, %35, %36 : vector<8x128xi32>
    %38 = arith.ori %33, %37 : vector<8x128xi1>
    %39 = vector.extract_strided_slice %3 {offsets = [0, 6], sizes = [8, 1], strides = [1, 1]} : vector<8x12xi32> to vector<8x1xi32>
    %40 = vector.broadcast %39 : vector<8x1xi32> to vector<8x128xi32>
    %41 = vector.broadcast %9 : vector<1x128xi32> to vector<8x128xi32>
    %42 = arith.cmpi eq, %40, %41 : vector<8x128xi32>
    %43 = arith.ori %38, %42 : vector<8x128xi1>
    %44 = vector.extract_strided_slice %3 {offsets = [0, 7], sizes = [8, 1], strides = [1, 1]} : vector<8x12xi32> to vector<8x1xi32>
    %45 = vector.broadcast %44 : vector<8x1xi32> to vector<8x128xi32>
    %46 = vector.broadcast %9 : vector<1x128xi32> to vector<8x128xi32>
    %47 = arith.cmpi eq, %45, %46 : vector<8x128xi32>
    %48 = arith.ori %43, %47 : vector<8x128xi1>
    %49 = vector.extract_strided_slice %3 {offsets = [0, 8], sizes = [8, 1], strides = [1, 1]} : vector<8x12xi32> to vector<8x1xi32>
    %50 = vector.broadcast %49 : vector<8x1xi32> to vector<8x128xi32>
    %51 = vector.broadcast %9 : vector<1x128xi32> to vector<8x128xi32>
    %52 = arith.cmpi eq, %50, %51 : vector<8x128xi32>
    %53 = arith.ori %48, %52 : vector<8x128xi1>
    %54 = vector.extract_strided_slice %3 {offsets = [0, 9], sizes = [8, 1], strides = [1, 1]} : vector<8x12xi32> to vector<8x1xi32>
    %55 = vector.broadcast %54 : vector<8x1xi32> to vector<8x128xi32>
    %56 = vector.broadcast %9 : vector<1x128xi32> to vector<8x128xi32>
    %57 = arith.cmpi eq, %55, %56 : vector<8x128xi32>
    %58 = arith.ori %53, %57 : vector<8x128xi1>
    %59 = vector.extract_strided_slice %3 {offsets = [0, 10], sizes = [8, 1], strides = [1, 1]} : vector<8x12xi32> to vector<8x1xi32>
    %60 = vector.broadcast %59 : vector<8x1xi32> to vector<8x128xi32>
    %61 = vector.broadcast %9 : vector<1x128xi32> to vector<8x128xi32>
    %62 = arith.cmpi eq, %60, %61 : vector<8x128xi32>
    %63 = arith.ori %58, %62 : vector<8x128xi1>
    %64 = vector.extract_strided_slice %3 {offsets = [0, 11], sizes = [8, 1], strides = [1, 1]} : vector<8x12xi32> to vector<8x1xi32>
    %65 = vector.broadcast %64 : vector<8x1xi32> to vector<8x128xi32>
    %66 = vector.broadcast %9 : vector<1x128xi32> to vector<8x128xi32>
    %67 = arith.cmpi eq, %65, %66 : vector<8x128xi32>
    %68 = arith.ori %63, %67 : vector<8x128xi1>
    %c2_i32 = arith.constant 2 : i32
    %69 = arith.muli %arg1, %c2_i32 : i32
    %c0_i32_5 = arith.constant 0 : i32
    %70 = arith.addi %69, %c0_i32_5 : i32
    %71 = arith.index_cast %70 : i32 to index
    %c0_6 = arith.constant 0 : index
    %72 = vector.load %arg4[%71, %c0_6] : memref<8x128xf32, #tpu.memory_space<vmem>>, vector<1x128xf32>
    %cst = arith.constant 0.000000e+00 : f32
    %73 = vector.shape_cast %72 : vector<1x128xf32> to vector<1x128xf32>
    %74 = vector.broadcast %73 : vector<1x128xf32> to vector<8x128xf32>
    %75 = vector.broadcast %cst : f32 to vector<8x128xf32>
    %76 = arith.select %68, %74, %75 : vector<8x128xi1>, vector<8x128xf32>
    %77 = arith.addf %6, %76 : vector<8x128xf32>
    %c128_i32 = arith.constant 128 : i32
    %78 = arith.addi %5, %c128_i32 : i32
    %79 = vector.broadcast %78 : i32 to vector<1x128xi32>
    %80 = arith.addi %4, %79 : vector<1x128xi32>
    %81 = vector.extract_strided_slice %3 {offsets = [0, 0], sizes = [8, 1], strides = [1, 1]} : vector<8x12xi32> to vector<8x1xi32>
    %82 = vector.broadcast %81 : vector<8x1xi32> to vector<8x128xi32>
    %83 = vector.broadcast %80 : vector<1x128xi32> to vector<8x128xi32>
    %84 = arith.cmpi eq, %82, %83 : vector<8x128xi32>
    %85 = vector.extract_strided_slice %3 {offsets = [0, 1], sizes = [8, 1], strides = [1, 1]} : vector<8x12xi32> to vector<8x1xi32>
    %86 = vector.broadcast %85 : vector<8x1xi32> to vector<8x128xi32>
    %87 = vector.broadcast %80 : vector<1x128xi32> to vector<8x128xi32>
    %88 = arith.cmpi eq, %86, %87 : vector<8x128xi32>
    %89 = arith.ori %84, %88 : vector<8x128xi1>
    %90 = vector.extract_strided_slice %3 {offsets = [0, 2], sizes = [8, 1], strides = [1, 1]} : vector<8x12xi32> to vector<8x1xi32>
    %91 = vector.broadcast %90 : vector<8x1xi32> to vector<8x128xi32>
    %92 = vector.broadcast %80 : vector<1x128xi32> to vector<8x128xi32>
    %93 = arith.cmpi eq, %91, %92 : vector<8x128xi32>
    %94 = arith.ori %89, %93 : vector<8x128xi1>
    %95 = vector.extract_strided_slice %3 {offsets = [0, 3], sizes = [8, 1], strides = [1, 1]} : vector<8x12xi32> to vector<8x1xi32>
    %96 = vector.broadcast %95 : vector<8x1xi32> to vector<8x128xi32>
    %97 = vector.broadcast %80 : vector<1x128xi32> to vector<8x128xi32>
    %98 = arith.cmpi eq, %96, %97 : vector<8x128xi32>
    %99 = arith.ori %94, %98 : vector<8x128xi1>
    %100 = vector.extract_strided_slice %3 {offsets = [0, 4], sizes = [8, 1], strides = [1, 1]} : vector<8x12xi32> to vector<8x1xi32>
    %101 = vector.broadcast %100 : vector<8x1xi32> to vector<8x128xi32>
    %102 = vector.broadcast %80 : vector<1x128xi32> to vector<8x128xi32>
    %103 = arith.cmpi eq, %101, %102 : vector<8x128xi32>
    %104 = arith.ori %99, %103 : vector<8x128xi1>
    %105 = vector.extract_strided_slice %3 {offsets = [0, 5], sizes = [8, 1], strides = [1, 1]} : vector<8x12xi32> to vector<8x1xi32>
    %106 = vector.broadcast %105 : vector<8x1xi32> to vector<8x128xi32>
    %107 = vector.broadcast %80 : vector<1x128xi32> to vector<8x128xi32>
    %108 = arith.cmpi eq, %106, %107 : vector<8x128xi32>
    %109 = arith.ori %104, %108 : vector<8x128xi1>
    %110 = vector.extract_strided_slice %3 {offsets = [0, 6], sizes = [8, 1], strides = [1, 1]} : vector<8x12xi32> to vector<8x1xi32>
    %111 = vector.broadcast %110 : vector<8x1xi32> to vector<8x128xi32>
    %112 = vector.broadcast %80 : vector<1x128xi32> to vector<8x128xi32>
    %113 = arith.cmpi eq, %111, %112 : vector<8x128xi32>
    %114 = arith.ori %109, %113 : vector<8x128xi1>
    %115 = vector.extract_strided_slice %3 {offsets = [0, 7], sizes = [8, 1], strides = [1, 1]} : vector<8x12xi32> to vector<8x1xi32>
    %116 = vector.broadcast %115 : vector<8x1xi32> to vector<8x128xi32>
    %117 = vector.broadcast %80 : vector<1x128xi32> to vector<8x128xi32>
    %118 = arith.cmpi eq, %116, %117 : vector<8x128xi32>
    %119 = arith.ori %114, %118 : vector<8x128xi1>
    %120 = vector.extract_strided_slice %3 {offsets = [0, 8], sizes = [8, 1], strides = [1, 1]} : vector<8x12xi32> to vector<8x1xi32>
    %121 = vector.broadcast %120 : vector<8x1xi32> to vector<8x128xi32>
    %122 = vector.broadcast %80 : vector<1x128xi32> to vector<8x128xi32>
    %123 = arith.cmpi eq, %121, %122 : vector<8x128xi32>
    %124 = arith.ori %119, %123 : vector<8x128xi1>
    %125 = vector.extract_strided_slice %3 {offsets = [0, 9], sizes = [8, 1], strides = [1, 1]} : vector<8x12xi32> to vector<8x1xi32>
    %126 = vector.broadcast %125 : vector<8x1xi32> to vector<8x128xi32>
    %127 = vector.broadcast %80 : vector<1x128xi32> to vector<8x128xi32>
    %128 = arith.cmpi eq, %126, %127 : vector<8x128xi32>
    %129 = arith.ori %124, %128 : vector<8x128xi1>
    %130 = vector.extract_strided_slice %3 {offsets = [0, 10], sizes = [8, 1], strides = [1, 1]} : vector<8x12xi32> to vector<8x1xi32>
    %131 = vector.broadcast %130 : vector<8x1xi32> to vector<8x128xi32>
    %132 = vector.broadcast %80 : vector<1x128xi32> to vector<8x128xi32>
    %133 = arith.cmpi eq, %131, %132 : vector<8x128xi32>
    %134 = arith.ori %129, %133 : vector<8x128xi1>
    %135 = vector.extract_strided_slice %3 {offsets = [0, 11], sizes = [8, 1], strides = [1, 1]} : vector<8x12xi32> to vector<8x1xi32>
    %136 = vector.broadcast %135 : vector<8x1xi32> to vector<8x128xi32>
    %137 = vector.broadcast %80 : vector<1x128xi32> to vector<8x128xi32>
    %138 = arith.cmpi eq, %136, %137 : vector<8x128xi32>
    %139 = arith.ori %134, %138 : vector<8x128xi1>
    %c2_i32_7 = arith.constant 2 : i32
    %140 = arith.muli %arg1, %c2_i32_7 : i32
    %c1_i32 = arith.constant 1 : i32
    %141 = arith.addi %140, %c1_i32 : i32
    %142 = arith.index_cast %141 : i32 to index
    %c0_8 = arith.constant 0 : index
    %143 = vector.load %arg4[%142, %c0_8] : memref<8x128xf32, #tpu.memory_space<vmem>>, vector<1x128xf32>
    %cst_9 = arith.constant 0.000000e+00 : f32
    %144 = vector.shape_cast %143 : vector<1x128xf32> to vector<1x128xf32>
    %145 = vector.broadcast %144 : vector<1x128xf32> to vector<8x128xf32>
    %146 = vector.broadcast %cst_9 : f32 to vector<8x128xf32>
    %147 = arith.select %139, %145, %146 : vector<8x128xi1>, vector<8x128xf32>
    %148 = arith.addf %77, %147 : vector<8x128xf32>
    %c0_10 = arith.constant 0 : index
    %c0_11 = arith.constant 0 : index
    %149 = vector.load %arg6[%c0_10, %c0_11] : memref<8x128xf32, #tpu.memory_space<vmem>>, vector<8x128xf32>
    tpu.vector_store %arg6[%c0_10, %c0_11], %148 {strides = array<i32>} : memref<8x128xf32, #tpu.memory_space<vmem>>, vector<8x128xf32>,
    %c3_i32 = arith.constant 3 : i32
    %150 = arith.cmpi eq, %arg1, %c3_i32 : i32
    %151 = arith.extui %150 : i1 to i32
    %c0_i32_12 = arith.constant 0 : i32
    %152 = arith.cmpi ne, %151, %c0_i32_12 : i32
    scf.if %152 {
      %c0_13 = arith.constant 0 : index
      %c0_14 = arith.constant 0 : index
      %153 = vector.load %arg6[%c0_13, %c0_14] : memref<8x128xf32, #tpu.memory_space<vmem>>, vector<8x128xf32>
      %cst_15 = arith.constant dense<0.000000e+00> : vector<8xf32>
      %154 = vector.multi_reduction <add>, %153, %cst_15 [1] : vector<8x128xf32> to vector<8xf32>
      %155 = vector.shape_cast %154 : vector<8xf32> to vector<8x1xf32>
      %c0_16 = arith.constant 0 : index
      %156 = memref.load %arg2[%c0_16] : memref<1xf32, #tpu.memory_space<smem>>
      %157 = vector.broadcast %156 : f32 to vector<8x1xf32>
      %158 = arith.addf %155, %157 : vector<8x1xf32>
      %c0_17 = arith.constant 0 : index
      %c0_18 = arith.constant 0 : index
      %159 = vector.load %arg5[%c0_17, %c0_18] : memref<8x1xf32, #tpu.memory_space<vmem>>, vector<8x1xf32>
      tpu.vector_store %arg5[%c0_17, %c0_18], %158 {strides = array<i32>} : memref<8x1xf32, #tpu.memory_space<vmem>>, vector<8x1xf32>,
    } else {
    }
    return
  }
  func.func @transform_0(%arg0: i32, %arg1: i32) -> i32 {
    %c0_i32 = arith.constant 0 : i32
    %c0_i32_0 = arith.constant 0 : i32
    return %c0_i32 : i32
  }
  func.func @transform_1(%arg0: i32, %arg1: i32) -> (i32, i32) {
    %c0_i32 = arith.constant 0 : i32
    %c0_i32_0 = arith.constant 0 : i32
    return %arg0, %c0_i32 : i32, i32
  }
  func.func @transform_2(%arg0: i32, %arg1: i32) -> (i32, i32) {
    %c0_i32 = arith.constant 0 : i32
    %c0_i32_0 = arith.constant 0 : i32
    %c0_i32_1 = arith.constant 0 : i32
    return %c0_i32, %c0_i32_0 : i32, i32
  }
  func.func @transform_3(%arg0: i32, %arg1: i32) -> (i32, i32) {
    %c0_i32 = arith.constant 0 : i32
    %c0_i32_0 = arith.constant 0 : i32
    return %arg0, %c0_i32 : i32, i32
  }
}

</mosaic_0001>

<llo_original>
// kernel: tpu_custom_call.1
$region0: #{tpu_custom_call.1}
  #allocation0 [shape = 'u32[]', space=smem, size = 0x4, offset = 0x4, fixed_abs, tag = 'smem constant byte address 0x4 - core index']
  #allocation1 [shape = 'u32[144,128]{1,0:T(1,128)}', space=vmem, size = 0x12000, scoped, tag = 'internal scratch']
  #allocation2 [shape = 'f32[8,128]{1,0:T(8,128)}', space=vmem, size = 0x1000, scoped, tag = 'scratch operand']
  #allocation3 [shape = 'f32[1]{0:T(128)S(6)}', space=smem, size = 0x200, scoped, tag = 'scoped memory for tpu_custom_call.1']
  %s0 = inlined_call_operand.<no memory space> [shape: f32[1], index: 0, kind: input, shape index: {}]
  %s1 = inlined_call_operand.hbm [shape: s32[16,12], index: 1, kind: input, shape index: {}]
  %s2 = inlined_call_operand.hbm [shape: f32[8,128], index: 2, kind: input, shape index: {}]
  %s3 = inlined_call_operand.vmem [shape: f32[16,1], index: 3, kind: output, shape index: {}]
  %s4 = sld [smem:[#allocation0]]
  $region61: #{tpu_custom_call.1} parent=0
    _
  %s6 = ssub.s32 1, %s4
  %s7 = scalar_select 0, %s6, %s4
  %8 = sst [smem:[#allocation3]] %s0
  $region1: #{tpu_custom_call.1} parent=0
    #allocation4 [shape = 'u8[8192]{0}', space=vmem, size = 0x2000, scoped, tag = 'input window, operand 1']
    #allocation5 [shape = 's32[2]{0}', space=sflag, size = 0x8, scoped, tag = 'scoped memory for tpu_custom_call.1']
    #allocation6 [shape = 'u8[4096]{0}', space=vmem, size = 0x1000, scoped, tag = 'input window, operand 2, single buffered']
    #allocation7 [shape = 's32[1]{0}', space=sflag, size = 0x4, scoped, tag = 'scoped memory for tpu_custom_call.1']
    %9 = vsyncpa [#allocation5], 0
    %s10 = scalar_lea.sflag [#allocation5], 1
    %11 = vsyncpa %s10, 0
    %12 = vsyncpa [#allocation7], 0
    loop: start=0, step=1, limit=10
    $region2: #{tpu_custom_call.1} parent=1 // loop_pre_header
      _
    $region3: #{tpu_custom_call.1} parent=1 // loop_header
      %s14 = sphi 0, %s18
      %p15 = scmp.ge.s32.totalorder %s14, 10
      %s21 = sphi 0, %s33
      %s22 = sphi 0, %s29
      %s23 = sphi 0, %s21
      %s24 = sphi 0, %s22
      %s25 = sphi 0, %s23
      %s26 = sphi 0, %s24
      %s34 = sphi 0, %s34
      %s36 = sphi 0, %s34
      %s37 = sphi 0, %s36
      %s51 = sphi 0, %s37
      %s57 = sphi 0, %s59
      %s60 = sphi 0, %s57
      %s61 = sphi 0, %s60
      %s77 = sphi 0, %s61
      %s81 = sphi 0, %s81
      %s83 = sphi 0, %s81
      %s84 = sphi 0, %s83
      %s98 = sphi 0, %s84
      %s104 = sphi 0, %s106
      %s107 = sphi 0, %s104
      %s108 = sphi 0, %s107
      %s124 = sphi 0, %s108
    $region4: #{tpu_custom_call.1} parent=1 // loop_header_branch
      %17 = sbr.rel (%p15) target = $region8
    $region5: #{tpu_custom_call.1} parent=1 // loop_body
      %s19 = ssub.s32 %s14, 1
      %s20 = ssub.s32 %s14, 2
      %s27 = sadd.s32 1, %s22
      %p28 = scmp.ge.s32.totalorder %s27, 4
      %s29 = scalar_select %p28, 0, %s27
      %s30 = sadd.s32 1, %s21
      %s31 = scalar_select %p28, %s30, %s21
      %p32 = scmp.ge.s32.totalorder %s31, 2
      %s33 = scalar_select %p32, 0, %s31
      %s35 = sadd.s32 %s34, 1
      %p38 = scmp.eq.s32.totalorder %s14, 7
      %p39 = scmp.ne.s32.totalorder %s34, %s36
      %p40 = scmp.eq.s32.totalorder %s14, 0
      %p41 = por %p39, %p40
      %p42 = scmp.ne.s32.totalorder %s34, %s36
      %p43 = scmp.eq.s32.totalorder %s19, 7
      %p44 = por %p42, %p43
      %p45 = scmp.ne.s32.totalorder %s36, %s37
      %p46 = scmp.eq.s32.totalorder %s19, 0
      %p47 = por %p45, %p46
      %p48 = scmp.ne.s32.totalorder %s36, %s37
      %p49 = scmp.eq.s32.totalorder %s20, 7
      %p50 = por %p48, %p49
      %p52 = scmp.ne.s32.totalorder %s37, %s51
      %p53 = scmp.eq.s32.totalorder %s20, 0
      %p54 = por %p52, %p53
      %s55 = ssub.s32 %s21, %s33
      %p56 = scmp.eq.s32.totalorder %s55, 0
      %s58 = sadd.s32 %s57, 1
      %s59 = scalar_select %p56, %s57, %s58
      %p62 = pneg %p56
      %p63 = scmp.eq.s32.totalorder %s14, 7
      %p64 = por %p62, %p63
      %p65 = scmp.ne.s32.totalorder %s57, %s60
      %p66 = scmp.eq.s32.totalorder %s14, 0
      %p67 = por %p65, %p66
      %p68 = scmp.ne.s32.totalorder %s57, %s60
      %p69 = scmp.eq.s32.totalorder %s19, 7
      %p70 = por %p68, %p69
      %p71 = scmp.ne.s32.totalorder %s60, %s61
      %p72 = scmp.eq.s32.totalorder %s19, 0
      %p73 = por %p71, %p72
      %p74 = scmp.ne.s32.totalorder %s60, %s61
      %p75 = scmp.eq.s32.totalorder %s20, 7
      %p76 = por %p74, %p75
      %p78 = scmp.ne.s32.totalorder %s61, %s77
      %p79 = scmp.eq.s32.totalorder %s20, 0
      %p80 = por %p78, %p79
      %s82 = sadd.s32 %s81, 1
      %p85 = scmp.eq.s32.totalorder %s14, 7
      %p86 = scmp.ne.s32.totalorder %s81, %s83
      %p87 = scmp.eq.s32.totalorder %s14, 0
      %p88 = por %p86, %p87
      %p89 = scmp.ne.s32.totalorder %s81, %s83
      %p90 = scmp.eq.s32.totalorder %s19, 7
      %p91 = por %p89, %p90
      %p92 = scmp.ne.s32.totalorder %s83, %s84
      %p93 = scmp.eq.s32.totalorder %s19, 0
      %p94 = por %p92, %p93
      %p95 = scmp.ne.s32.totalorder %s83, %s84
      %p96 = scmp.eq.s32.totalorder %s20, 7
      %p97 = por %p95, %p96
      %p99 = scmp.ne.s32.totalorder %s84, %s98
      %p100 = scmp.eq.s32.totalorder %s20, 0
      %p101 = por %p99, %p100
      %s102 = ssub.s32 %s21, %s33
      %p103 = scmp.eq.s32.totalorder %s102, 0
      %s105 = sadd.s32 %s104, 1
      %s106 = scalar_select %p103, %s104, %s105
      %p109 = pneg %p103
      %p110 = scmp.eq.s32.totalorder %s14, 7
      %p111 = por %p109, %p110
      %p112 = scmp.ne.s32.totalorder %s104, %s107
      %p113 = scmp.eq.s32.totalorder %s14, 0
      %p114 = por %p112, %p113
      %p115 = scmp.ne.s32.totalorder %s104, %s107
      %p116 = scmp.eq.s32.totalorder %s19, 7
      %p117 = por %p115, %p116
      %p118 = scmp.ne.s32.totalorder %s107, %s108
      %p119 = scmp.eq.s32.totalorder %s19, 0
      %p120 = por %p118, %p119
      %p121 = scmp.ne.s32.totalorder %s107, %s108
      %p122 = scmp.eq.s32.totalorder %s20, 7
      %p123 = por %p121, %p122
      %p125 = scmp.ne.s32.totalorder %s108, %s124
      %p126 = scmp.eq.s32.totalorder %s20, 0
      %p127 = por %p125, %p126
      %p128 = scmp.le.s32.totalorder 1, %s14
      %p129 = scmp.lt.s32.totalorder %s14, 9
      %p130 = pnand %p128, %p129
      %p131 = pneg %p130
      // Predicated region
      $region9: #{tpu_custom_call.1} parent=5 // pred_check
        _
      $region10: #{tpu_custom_call.1} parent=5 // pred_check_branch
        %133 = sbr.rel (%p130) target = $region12
      $region11: #{tpu_custom_call.1} parent=5 // pred_region
        %s134 = ssub.s32 %s14, 1
        // Predicated region
        $region13: #{tpu_custom_call.1} parent=11 // pred_check
          %p135 = pneg %p47
        $region14: #{tpu_custom_call.1} parent=11 // pred_check_branch
          %137 = sbr.rel (%p135) target = $region16
        $region15: #{tpu_custom_call.1} parent=11 // pred_region
          _
        $region16: #{tpu_custom_call.1} parent=11 // pred_fallthru
          _
        // Predicated region
        $region17: #{tpu_custom_call.1} parent=11 // pred_check
          %p138 = pneg %p94
        $region18: #{tpu_custom_call.1} parent=11 // pred_check_branch
          %140 = sbr.rel (%p138) target = $region20
        $region19: #{tpu_custom_call.1} parent=11 // pred_region
          %s142 = ssub.s32 128, 128
          %143 = vsyncadd [#allocation7], %s142
          %s145 = sshll.u32 [#allocation6], 4
          %s146 = int_to_ptr.vmem [resolvable:$true] %s145
          %148 = dma.hbm_to_vmem [thread:$0]  %s2, 128, %s146, [#allocation7]
        $region20: #{tpu_custom_call.1} parent=11 // pred_fallthru
          _
      $region12: #{tpu_custom_call.1} parent=5 // pred_fallthru
        _
      %p149 = scmp.lt.s32.totalorder %s14, 8
      // Predicated region
      $region21: #{tpu_custom_call.1} parent=5 // pred_check
        %p150 = pneg %p149
      $region22: #{tpu_custom_call.1} parent=5 // pred_check_branch
        %152 = sbr.rel (%p150) target = $region24
      $region23: #{tpu_custom_call.1} parent=5 // pred_region
        // Predicated region
        $region25: #{tpu_custom_call.1} parent=23 // pred_check
          %p153 = pneg %p67
        $region26: #{tpu_custom_call.1} parent=23 // pred_check_branch
          %155 = sbr.rel (%p153) target = $region28
        $region27: #{tpu_custom_call.1} parent=23 // pred_region
          %s156 = sand.u32 %s57, 1
          %s157 = scalar_lea.sflag [#allocation5], %s156
          %s158 = sand.u32 %s57, 1
          %s159 = smul.addr %s158, 8
          %s160 = scalar_lea.vmem [#allocation4], %s159
          %s162 = ssub.s32 128, 128
          %163 = vsyncadd %s157, %s162
          %s164 = smul.addr %s21, 128
          %s165 = scalar_lea.hbm %s1, %s164
          %s167 = sshll.u32 %s160, 4
          %s168 = int_to_ptr.vmem [resolvable:$true] %s167
          %170 = dma.hbm_to_vmem [thread:$0]  %s165, 128, %s168, %s157
        $region28: #{tpu_custom_call.1} parent=23 // pred_fallthru
          _
      $region24: #{tpu_custom_call.1} parent=5 // pred_fallthru
        _
      %p171 = scmp.le.s32.totalorder 1, %s14
      %p172 = scmp.lt.s32.totalorder %s14, 9
      %p173 = pnand %p171, %p172
      %p174 = pneg %p173
      // Predicated region
      $region29: #{tpu_custom_call.1} parent=5 // pred_check
        _
      $region30: #{tpu_custom_call.1} parent=5 // pred_check_branch
        %176 = sbr.rel (%p173) target = $region32
      $region31: #{tpu_custom_call.1} parent=5 // pred_region
        %s177 = ssub.s32 %s14, 1
        %s178 = sand.u32 %s60, 1
        %s179 = scalar_lea.sflag [#allocation5], %s178
        %s180 = sand.u32 %s60, 1
        %s181 = smul.addr %s180, 8
        %s182 = scalar_lea.vmem [#allocation4], %s181
        // Predicated region
        $region33: #{tpu_custom_call.1} parent=31 // pred_check
          %p183 = pneg %p73
        $region34: #{tpu_custom_call.1} parent=31 // pred_check_branch
          %185 = sbr.rel (%p183) target = $region36
        $region35: #{tpu_custom_call.1} parent=31 // pred_region
          %186 = dma.done %s179, 128
        $region36: #{tpu_custom_call.1} parent=31 // pred_fallthru
          _
        // Predicated region
        $region37: #{tpu_custom_call.1} parent=31 // pred_check
          %p187 = pneg %p94
        $region38: #{tpu_custom_call.1} parent=31 // pred_check_branch
          %189 = sbr.rel (%p187) target = $region40
        $region39: #{tpu_custom_call.1} parent=31 // pred_region
          %190 = dma.done [#allocation7], 128
        $region40: #{tpu_custom_call.1} parent=31 // pred_fallthru
          _
        %p191 = pneg %p47
        %p192 = pneg %p44
        %s193 = sand.u32 %s60, 1
        %s194 = scalar_lea.sflag [#allocation5], %s193
        %s195 = sand.u32 %s60, 1
        %s196 = smul.addr %s195, 8
        %s197 = scalar_lea.vmem [#allocation4], %s196
        %p198 = pneg %p73
        %p199 = pneg %p70
        %p200 = pneg %p94
        %p201 = pneg %p91
        %p202 = pneg %p120
        %p203 = pneg %p117
        %p204 = scmp.lt.s32.totalorder %s23, 1
        %s205 = scalar_select %p204, %s23, 1
        %s206 = smul.addr %s205, 8
        %s207 = scalar_lea.vmem %s3, %s206
        %p208 = scmp.lt.s32.totalorder %s23, 1
        %s209 = scalar_select %p208, %s23, 1
        %s210 = smul.addr %s209, 8
        %s211 = scalar_lea.vmem %s3, %s210
        %p212 = scmp.eq.s32.totalorder %s24, 0
        // Predicated region
        $region41: #{tpu_custom_call.1} parent=31 // pred_check
          %p213 = pneg %p212
        $region42: #{tpu_custom_call.1} parent=31 // pred_check_branch
          %215 = sbr.rel (%p213) target = $region44
        $region43: #{tpu_custom_call.1} parent=31 // pred_region
          %216 = vst [vmem:[#allocation2] sm:$0xff] 0.0
        $region44: #{tpu_custom_call.1} parent=31 // pred_fallthru
          _
        %v217 = vld [vmem:[%s182] sm:$0xff]
        %v218 = vlaneseq
        %v219 = vand.u32 %v218, 127
        %s220 = smul.u32 %s24, 256
        %v221 = vld [vmem:[#allocation2] sm:$0xff]
        %v222 = vstv %s220
        %v223 = vadd.s32 %v219, %v222
        %224 = vset.pattern.permute.xlu0 0
        %225 = vperm.xlu0 %224, %v217
        %v226 = vpop.permute.xlu0 %225
        %vm227 = vcmp.eq.s32.totalorder %v226, %v223
        %228 = vset.pattern.permute.xlu0 1
        %229 = vperm.xlu0 %228, %v217
        %v230 = vpop.permute.xlu0 %229
        %vm231 = vcmp.eq.s32.totalorder %v230, %v223
        %vm232 = vmor %vm227, %vm231
        %233 = vset.pattern.permute.xlu0 2
        %234 = vperm.xlu0 %233, %v217
        %v235 = vpop.permute.xlu0 %234
        %vm236 = vcmp.eq.s32.totalorder %v235, %v223
        %vm237 = vmor %vm232, %vm236
        %238 = vset.pattern.permute.xlu0 3
        %239 = vperm.xlu0 %238, %v217
        %v240 = vpop.permute.xlu0 %239
        %vm241 = vcmp.eq.s32.totalorder %v240, %v223
        %vm242 = vmor %vm237, %vm241
        %243 = vset.pattern.permute.xlu0 4
        %244 = vperm.xlu0 %243, %v217
        %v245 = vpop.permute.xlu0 %244
        %vm246 = vcmp.eq.s32.totalorder %v245, %v223
        %vm247 = vmor %vm242, %vm246
        %248 = vset.pattern.permute.xlu0 5
        %249 = vperm.xlu0 %248, %v217
        %v250 = vpop.permute.xlu0 %249
        %vm251 = vcmp.eq.s32.totalorder %v250, %v223
        %vm252 = vmor %vm247, %vm251
        %253 = vset.pattern.permute.xlu0 6
        %254 = vperm.xlu0 %253, %v217
        %v255 = vpop.permute.xlu0 %254
        %vm256 = vcmp.eq.s32.totalorder %v255, %v223
        %vm257 = vmor %vm252, %vm256
        %258 = vset.pattern.permute.xlu0 7
        %259 = vperm.xlu0 %258, %v217
        %v260 = vpop.permute.xlu0 %259
        %vm261 = vcmp.eq.s32.totalorder %v260, %v223
        %vm262 = vmor %vm257, %vm261
        %263 = vset.pattern.permute.xlu0 8
        %264 = vperm.xlu0 %263, %v217
        %v265 = vpop.permute.xlu0 %264
        %vm266 = vcmp.eq.s32.totalorder %v265, %v223
        %vm267 = vmor %vm262, %vm266
        %268 = vset.pattern.permute.xlu0 9
        %269 = vperm.xlu0 %268, %v217
        %v270 = vpop.permute.xlu0 %269
        %vm271 = vcmp.eq.s32.totalorder %v270, %v223
        %vm272 = vmor %vm267, %vm271
        %273 = vset.pattern.permute.xlu0 10
        %274 = vperm.xlu0 %273, %v217
        %v275 = vpop.permute.xlu0 %274
        %vm276 = vcmp.eq.s32.totalorder %v275, %v223
        %vm277 = vmor %vm272, %vm276
        %278 = vset.pattern.permute.xlu0 11
        %279 = vperm.xlu0 %278, %v217
        %v280 = vpop.permute.xlu0 %279
        %vm281 = vcmp.eq.s32.totalorder %v280, %v223
        %vm282 = vmor %vm277, %vm281
        %s283 = smul.u32 %s24, 2
        %s284 = scalar_lea.vmem [#allocation6], %s283
        %v285 = vld [vmem:[%s284] sm:$0x1]
        %v286 = vlaneseq
        %v287 = vshrl.u32 %v286, 7
        %v288 = vsub.s32 0, %v287
        %v289 = vrot.slane %v285, %v288
        %v290 = vsel %vm282, %v289, 0.0
        %v291 = vadd.f32 %v221, %v290
        %s292 = sadd.s32 %s220, 128
        %v293 = vstv %s292
        %v294 = vadd.s32 %v219, %v293
        %vm295 = vcmp.eq.s32.totalorder %v226, %v294
        %vm296 = vcmp.eq.s32.totalorder %v230, %v294
        %vm297 = vmor %vm295, %vm296
        %vm298 = vcmp.eq.s32.totalorder %v235, %v294
        %vm299 = vmor %vm297, %vm298
        %vm300 = vcmp.eq.s32.totalorder %v240, %v294
        %vm301 = vmor %vm299, %vm300
        %vm302 = vcmp.eq.s32.totalorder %v245, %v294
        %vm303 = vmor %vm301, %vm302
        %vm304 = vcmp.eq.s32.totalorder %v250, %v294
        %vm305 = vmor %vm303, %vm304
        %vm306 = vcmp.eq.s32.totalorder %v255, %v294
        %vm307 = vmor %vm305, %vm306
        %vm308 = vcmp.eq.s32.totalorder %v260, %v294
        %vm309 = vmor %vm307, %vm308
        %vm310 = vcmp.eq.s32.totalorder %v265, %v294
        %vm311 = vmor %vm309, %vm310
        %vm312 = vcmp.eq.s32.totalorder %v270, %v294
        %vm313 = vmor %vm311, %vm312
        %vm314 = vcmp.eq.s32.totalorder %v275, %v294
        %vm315 = vmor %vm313, %vm314
        %vm316 = vcmp.eq.s32.totalorder %v280, %v294
        %vm317 = vmor %vm315, %vm316
        %s318 = sadd.s32 %s283, 1
        %s319 = scalar_lea.vmem [#allocation6], %s318
        %v320 = vld [vmem:[%s319] sm:$0x1]
        %v321 = vlaneseq
        %v322 = vshrl.u32 %v321, 7
        %v323 = vsub.s32 0, %v322
        %v324 = vrot.slane %v320, %v323
        %v325 = vsel %vm317, %v324, 0.0
        %v326 = vadd.f32 %v291, %v325
        %327 = vst [vmem:[#allocation2] sm:$0xff] %v326
        %p328 = scmp.eq.s32.totalorder %s24, 3
        // Predicated region
        $region45: #{tpu_custom_call.1} parent=31 // pred_check
          %p329 = pneg %p328
        $region46: #{tpu_custom_call.1} parent=31 // pred_check_branch
          %331 = sbr.rel (%p329) target = $region48
        $region47: #{tpu_custom_call.1} parent=31 // pred_region
          %v332 = vld [vmem:[#allocation2] sm:$0xff]
          %333 = vadd.xlane.f32.xlu0 %v332
          %v334 = vpop.xlane.xlu0 %333
          %s335 = sld [smem:[#allocation3]]
          %v336 = vstv %s335
          %v337 = vadd.f32 %v334, %v336
          %vm338 = vcmask 7168
          %339 = vst.msk [vmem:[%s211] sm:$0xff] %vm338, %v337
        $region48: #{tpu_custom_call.1} parent=31 // pred_fallthru
          _
        %p340 = scmp.lt.s32.totalorder %s23, 1
        %s341 = scalar_select %p340, %s23, 1
        %s342 = smul.addr %s341, 8
        %s343 = scalar_lea.vmem %s3, %s342
        // Predicated region
        $region49: #{tpu_custom_call.1} parent=31 // pred_check
          %p344 = pneg %p117
        $region50: #{tpu_custom_call.1} parent=31 // pred_check_branch
          %346 = sbr.rel (%p344) target = $region52
        $region51: #{tpu_custom_call.1} parent=31 // pred_region
          _
        $region52: #{tpu_custom_call.1} parent=31 // pred_fallthru
          _
      $region32: #{tpu_custom_call.1} parent=5 // pred_fallthru
        _
      %p347 = scmp.le.s32.totalorder 2, %s14
      // Predicated region
      $region53: #{tpu_custom_call.1} parent=5 // pred_check
        %p348 = pneg %p347
      $region54: #{tpu_custom_call.1} parent=5 // pred_check_branch
        %350 = sbr.rel (%p348) target = $region56
      $region55: #{tpu_custom_call.1} parent=5 // pred_region
        %s351 = ssub.s32 %s14, 2
        // Predicated region
        $region57: #{tpu_custom_call.1} parent=55 // pred_check
          %p352 = pneg %p123
        $region58: #{tpu_custom_call.1} parent=55 // pred_check_branch
          %354 = sbr.rel (%p352) target = $region60
        $region59: #{tpu_custom_call.1} parent=55 // pred_region
          %p355 = scmp.lt.s32.totalorder %s25, 1
          %s356 = scalar_select %p355, %s25, 1
          %s357 = smul.addr %s356, 8
          %s358 = scalar_lea.vmem %s3, %s357
        $region60: #{tpu_custom_call.1} parent=55 // pred_fallthru
          _
      $region56: #{tpu_custom_call.1} parent=5 // pred_fallthru
        _
    $region6: #{tpu_custom_call.1} parent=1 // loop_footer
      %s18 = sadd.s32 1, %s14
    $region7: #{tpu_custom_call.1} parent=1 // loop_footer_branch
      %13 = sbr.rel target = $region3
    $region8: #{tpu_custom_call.1} parent=1 // loop_exit
      _
    %359 = vsyncpa [#allocation5], 1
    %s360 = scalar_lea.sflag [#allocation5], 1
    %361 = vsyncpa %s360, 1
    %362 = vsyncpa [#allocation7], 1

</llo_original>
